<compile_context>
chip_gen: v7x
topology: tpu7x:2x2x1
jax: 0.10.0
libtpu: 0.0.40
codegen_flags: <defaults>
</compile_context>

<pallas_src>
import functools
import math

import jax
import jax.numpy as jnp
import numpy as np
from jax.experimental import pallas as pl
from jax.experimental.pallas import tpu as pltpu


# ---------------------------------------------------------------------------
# Shared single-timestep update (f32 math), used by both kernels.
# ---------------------------------------------------------------------------
def _step(x, z, v, r, a, ada, thr, perfect_reset, r_ts, decay_mem, decay_ada):
    is_refractory = r > 0.0

    # update_threshold
    a_new = decay_ada * a + (1.0 - decay_ada) * z
    thr_t = thr + ada * a_new                     # > 0 for this module

    # integrate
    if perfect_reset:
        v_new = decay_mem * v * (1.0 - z) + (1.0 - decay_mem) * x
    else:
        v_new = decay_mem * v + (1.0 - decay_mem) * x - z * thr_t

    # spike = heaviside((v - thr_t) / thr_t); since thr_t > 0 this is v > thr_t.
    z_new = (v_new > thr_t).astype(jnp.float32)
    z_new = jnp.where(is_refractory, 0.0, z_new)

    r_new = jnp.where(is_refractory, jnp.clip(r - 1.0, 0.0, r_ts), r_ts * z_new)
    return z_new, v_new, r_new, a_new


# ---------------------------------------------------------------------------
# Single-timestep kernel (exact forward() semantics).
# ---------------------------------------------------------------------------
def _make_step_kernel(thr, perfect_reset, refractory_timesteps,
                      decay_mem, decay_ada):
    r_ts = float(refractory_timesteps)

    def kernel(x_ref, z_ref, v_ref, r_ref, a_ref, ada_ref,
               z_out, v_out, r_out, a_out):
        f32 = jnp.float32
        z_new, v_new, r_new, a_new = _step(
            x_ref[...].astype(f32), z_ref[...].astype(f32),
            v_ref[...].astype(f32), r_ref[...].astype(f32),
            a_ref[...].astype(f32), ada_ref[...],
            thr, perfect_reset, r_ts, decay_mem, decay_ada)
        z_out[...] = z_new.astype(z_out.dtype)
        v_out[...] = v_new.astype(v_out.dtype)
        r_out[...] = r_new.astype(r_out.dtype)
        a_out[...] = a_new.astype(a_out.dtype)

    return kernel


# ---------------------------------------------------------------------------
# Fused-time-loop kernel: grid = (B-tiles, H-tiles, T), state resident in VMEM.
# ---------------------------------------------------------------------------
def _make_seq_kernel(thr, perfect_reset, refractory_timesteps,
                     decay_mem, decay_ada):
    r_ts = float(refractory_timesteps)

    def kernel(x_ref,                               # (TB, TH) x at timestep t
               z0_ref, v0_ref, r0_ref, a0_ref,      # (TB, TH) initial state
               ada_ref,                             # (1, TH) f32
               zs_ref,                              # (TB, TH) z at timestep t
               zf_ref, vf_ref, rf_ref, af_ref,      # (TB, TH) final state
               z_sc, v_sc, r_sc, a_sc):             # f32 VMEM scratch
        f32 = jnp.float32
        t = pl.program_id(2)

        @pl.when(t == 0)
        def _():
            z_sc[...] = z0_ref[...].astype(f32)
            v_sc[...] = v0_ref[...].astype(f32)
            r_sc[...] = r0_ref[...].astype(f32)
            a_sc[...] = a0_ref[...].astype(f32)

        z_new, v_new, r_new, a_new = _step(
            x_ref[...].astype(f32), z_sc[...], v_sc[...], r_sc[...], a_sc[...],
            ada_ref[...], thr, perfect_reset, r_ts, decay_mem, decay_ada)

        z_sc[...] = z_new
        v_sc[...] = v_new
        r_sc[...] = r_new
        a_sc[...] = a_new
        zs_ref[...] = z_new.astype(zs_ref.dtype)

        @pl.when(t == pl.num_programs(2) - 1)
        def _():
            zf_ref[...] = z_new.astype(zf_ref.dtype)
            vf_ref[...] = v_new.astype(vf_ref.dtype)
            rf_ref[...] = r_new.astype(rf_ref.dtype)
            af_ref[...] = a_new.astype(af_ref.dtype)

    return kernel


def _pick_tile(dim: int, max_tile: int, align: int) -> int:
    """Largest legal tile: full extent if it fits, else an aligned cap."""
    if dim <= max_tile:
        return dim
    return max((max_tile // align) * align, align)


_VMEM_LIMIT = 32 * 1024 * 1024   # raises v5e's 16 MiB scoped default


# ---------------------------------------------------------------------------
# Wrappers
# ---------------------------------------------------------------------------
@functools.partial(
    jax.jit,
    static_argnames=("thr", "perfect_reset", "refractory_timesteps",
                     "tau_mem", "tau_adaptation"),
    donate_argnums=(1,))
def ada_iaf_psc_delta_forward(x_t,                    # (B, H)
                              states,                 # (z, v, r, a), each (B, H)
                              adaptation_constant,    # (H,)
                              *,
                              thr: float = 1.0,
                              perfect_reset: bool = False,
                              refractory_timesteps: int = 1,
                              tau_mem: float = 20.0,
                              tau_adaptation: float = 20.0):
    """One timestep: returns (z_new, (z_new, v_new, r_new, a_new))."""
    z_t, v_t, r_t, a_t = states
    B, H = x_t.shape
    dtype = x_t.dtype

    decay_mem = math.exp(-1.0 / tau_mem)
    decay_ada = math.exp(-1.0 / tau_adaptation)

    ada_c = adaptation_constant.reshape(1, H).astype(jnp.float32)

    TB = _pick_tile(B, 256, 8)
    TH = _pick_tile(H, 1024, 128)
    grid = (pl.cdiv(H, TH), pl.cdiv(B, TB))          # H-tiles outer, B-tiles inner

    state_spec = pl.BlockSpec((TB, TH), lambda h, b: (b, h))
    ada_spec = pl.BlockSpec((1, TH), lambda h, b: (0, h))

    out_shape = tuple(jax.ShapeDtypeStruct((B, H), dtype) for _ in range(4))
    kernel = _make_step_kernel(thr, perfect_reset, refractory_timesteps,
                               decay_mem, decay_ada)

    z_new, v_new, r_new, a_new = pl.pallas_call(
        kernel,
        out_shape=out_shape,
        grid=grid,
        in_specs=[state_spec] * 5 + [ada_spec],
        out_specs=(state_spec,) * 4,
        input_output_aliases={1: 0, 2: 1, 3: 2, 4: 3},
        compiler_params=pltpu.CompilerParams(
            dimension_semantics=("parallel", "parallel"),
            vmem_limit_bytes=_VMEM_LIMIT),
    )(x_t, z_t, v_t, r_t, a_t, ada_c)

    return z_new, (z_new, v_new, r_new, a_new)


@functools.partial(
    jax.jit,
    static_argnames=("thr", "perfect_reset", "refractory_timesteps",
                     "tau_mem", "tau_adaptation"),
    donate_argnums=(1,))
def ada_iaf_psc_delta_sequence(x_seq,                 # (T, B, H)
                               states,                # (z, v, r, a), each (B, H)
                               adaptation_constant,   # (H,)
                               *,
                               thr: float = 1.0,
                               perfect_reset: bool = False,
                               refractory_timesteps: int = 1,
                               tau_mem: float = 20.0,
                               tau_adaptation: float = 20.0):
    """T timesteps fused into one kernel: returns (z_seq, final_states)."""
    z0, v0, r0, a0 = states
    T, B, H = x_seq.shape
    dtype = x_seq.dtype

    decay_mem = math.exp(-1.0 / tau_mem)
    decay_ada = math.exp(-1.0 / tau_adaptation)

    ada_c = adaptation_constant.reshape(1, H).astype(jnp.float32)

    TB = _pick_tile(B, 256, 8)
    TH = _pick_tile(H, 1024, 128)
    grid = (pl.cdiv(B, TB), pl.cdiv(H, TH), T)       # time innermost ("arbitrary")

    x_spec = pl.BlockSpec((None, TB, TH), lambda i, j, t: (t, i, j))
    state_spec = pl.BlockSpec((TB, TH), lambda i, j, t: (i, j))
    ada_spec = pl.BlockSpec((1, TH), lambda i, j, t: (0, j))

    out_shape = (jax.ShapeDtypeStruct((T, B, H), dtype),) + \
                tuple(jax.ShapeDtypeStruct((B, H), dtype) for _ in range(4))
    out_specs = (pl.BlockSpec((None, TB, TH), lambda i, j, t: (t, i, j)),
                 state_spec, state_spec, state_spec, state_spec)

    kernel = _make_seq_kernel(thr, perfect_reset, refractory_timesteps,
                              decay_mem, decay_ada)

    z_seq, z_f, v_f, r_f, a_f = pl.pallas_call(
        kernel,
        out_shape=out_shape,
        grid=grid,
        in_specs=[x_spec, state_spec, state_spec, state_spec, state_spec,
                  ada_spec],
        out_specs=out_specs,
        scratch_shapes=[pltpu.VMEM((TB, TH), jnp.float32)] * 4,
        input_output_aliases={1: 1, 2: 2, 3: 3, 4: 4},
        compiler_params=pltpu.CompilerParams(
            dimension_semantics=("parallel", "parallel", "arbitrary"),
            vmem_limit_bytes=_VMEM_LIMIT),
    )(x_seq, z0, v0, r0, a0, ada_c)

    return z_seq, (z_f, v_f, r_f, a_f)


# ---------------------------------------------------------------------------
# Pure-numpy reference (mirrors the torch forward).
# ---------------------------------------------------------------------------
def _reference_forward(x_t, states, adaptation_constant, thr, perfect_reset,
                       refractory_timesteps, tau_mem, tau_adaptation):
    z_t, v_t, r_t, a_t = states
    decay_mem = math.exp(-1.0 / tau_mem)
    decay_ada = math.exp(-1.0 / tau_adaptation)

    is_refractory = r_t > 0.0
    a_t = (decay_ada * a_t + (1.0 - decay_ada) * z_t).astype(np.float32)
    thr_t = (thr + adaptation_constant[None, :] * a_t).astype(np.float32)
    if perfect_reset:
        v_t = decay_mem * v_t * (1.0 - z_t) + (1.0 - decay_mem) * x_t
    else:
        v_t = decay_mem * v_t + (1.0 - decay_mem) * x_t - z_t * thr_t
    v_t = v_t.astype(np.float32)
    v_scaled = (v_t - thr_t) / thr_t
    z_new = (v_scaled > 0.0).astype(np.float32)
    z_new = np.where(is_refractory, np.zeros_like(z_new), z_new)
    r_new = np.where(is_refractory,
                     np.clip(r_t - 1.0, 0.0, float(refractory_timesteps)),
                     float(refractory_timesteps) * z_new).astype(np.float32)
    return z_new, (z_new, v_t, r_new, a_t)


if __name__ == "__main__":
    # Module configuration (small, deterministic; H is lane-dense).
    n_regular = 128
    n_adaptive = 128
    H = n_regular + n_adaptive          # 256
    B = 8
    T = 12
    thr = 1.0
    perfect_reset = False
    refractory_timesteps = 1
    tau_mem = 20.0
    tau_adaptation = 20.0
    adaptation_const_val = 1.0
    dtype = jnp.float32

    # adaptation_constant buffer: adaptive neurons first, then regular (=0)
    adaptation_constant = np.concatenate([
        np.full((n_adaptive,), adaptation_const_val, dtype=np.float32),
        np.zeros((n_regular,), dtype=np.float32),
    ])

    key = jax.random.PRNGKey(0)
    k1, k2, k3, k4, k5 = jax.random.split(key, 5)
    x_seq_np = np.asarray(jax.random.normal(k1, (T, B, H), dtype=dtype))
    z0_np = np.asarray((jax.random.uniform(k2, (B, H)) > 0.5).astype(dtype))
    v0_np = np.asarray(jax.random.normal(k3, (B, H), dtype=dtype))
    r0_np = np.asarray((jax.random.uniform(k4, (B, H)) > 0.7).astype(dtype))
    a0_np = np.asarray(0.1 * jax.random.uniform(k5, (B, H), dtype=dtype))

    hp = dict(thr=thr, perfect_reset=perfect_reset,
              refractory_timesteps=refractory_timesteps,
              tau_mem=tau_mem, tau_adaptation=tau_adaptation)

    # ---- references (numpy; computed before the donated kernel calls) ----
    ref_z_step, ref_states_step = _reference_forward(
        x_seq_np[0], (z0_np, v0_np, r0_np, a0_np), adaptation_constant,
        thr, perfect_reset, refractory_timesteps, tau_mem, tau_adaptation)

    ref_states = (z0_np, v0_np, r0_np, a0_np)
    ref_z_seq = []
    for t in range(T):
        zt, ref_states = _reference_forward(
            x_seq_np[t], ref_states, adaptation_constant,
            thr, perfect_reset, refractory_timesteps, tau_mem, tau_adaptation)
        ref_z_seq.append(zt)
    ref_z_seq = np.stack(ref_z_seq, axis=0)

    ada_dev = jnp.asarray(adaptation_constant)

    # ---- single-timestep kernel (fresh device buffers; states are donated) --
    states_step = tuple(jnp.asarray(s) for s in (z0_np, v0_np, r0_np, a0_np))
    out_step, new_states_step = ada_iaf_psc_delta_forward(
        jnp.asarray(x_seq_np[0]), states_step, ada_dev, **hp)
    out_step = jax.block_until_ready(out_step)
    new_states_step = jax.tree_util.tree_map(jax.block_until_ready,
                                             new_states_step)

    np.testing.assert_allclose(np.asarray(out_step), ref_z_step,
                               rtol=1e-5, atol=1e-5)
    for got, want in zip(new_states_step, ref_states_step):
        np.testing.assert_allclose(np.asarray(got), want, rtol=1e-5, atol=1e-5)

    # ---- fused time-loop kernel ---------------------------------------------
    states_seq = tuple(jnp.asarray(s) for s in (z0_np, v0_np, r0_np, a0_np))
    z_seq, final_states = ada_iaf_psc_delta_sequence(
        jnp.asarray(x_seq_np), states_seq, ada_dev, **hp)
    z_seq = jax.block_until_ready(z_seq)
    final_states = jax.tree_util.tree_map(jax.block_until_ready, final_states)

    np.testing.assert_allclose(np.asarray(z_seq), ref_z_seq,
                               rtol=1e-5, atol=1e-5)
    for got, want in zip(final_states, ref_states):
        np.testing.assert_allclose(np.asarray(got), want, rtol=1e-5, atol=1e-5)

    print("KERNEL_OK")
</pallas_src>

<mosaic_0001>
module attributes {stable_mosaic.version = 11 : i64} {
  func.func @kernel(%arg0: i32, %arg1: i32, %arg2: memref<8x256xf32, #tpu.memory_space<vmem>>, %arg3: memref<8x256xf32, #tpu.memory_space<vmem>>, %arg4: memref<8x256xf32, #tpu.memory_space<vmem>>, %arg5: memref<8x256xf32, #tpu.memory_space<vmem>>, %arg6: memref<8x256xf32, #tpu.memory_space<vmem>>, %arg7: memref<1x256xf32, #tpu.memory_space<vmem>>, %arg8: memref<8x256xf32, #tpu.memory_space<vmem>>, %arg9: memref<8x256xf32, #tpu.memory_space<vmem>>, %arg10: memref<8x256xf32, #tpu.memory_space<vmem>>, %arg11: memref<8x256xf32, #tpu.memory_space<vmem>>) attributes {dimension_semantics = [#tpu.dimension_semantics<parallel>, #tpu.dimension_semantics<parallel>], iteration_bounds = array<i64: 1, 1>, scalar_prefetch = 0 : i64, scratch_operands = 0 : i64, tpu.core_type = #tpu.core_type<tc>, window_params = [{transform_indices = @transform_0, window_bounds = array<i64: 8, 256>}, {transform_indices = @transform_1, window_bounds = array<i64: 8, 256>}, {transform_indices = @transform_2, window_bounds = array<i64: 8, 256>}, {transform_indices = @transform_3, window_bounds = array<i64: 8, 256>}, {transform_indices = @transform_4, window_bounds = array<i64: 8, 256>}, {transform_indices = @transform_5, window_bounds = array<i64: 1, 256>}, {transform_indices = @transform_6, window_bounds = array<i64: 8, 256>}, {transform_indices = @transform_7, window_bounds = array<i64: 8, 256>}, {transform_indices = @transform_8, window_bounds = array<i64: 8, 256>}, {transform_indices = @transform_9, window_bounds = array<i64: 8, 256>}]} {
    %c0 = arith.constant 0 : index
    %c0_0 = arith.constant 0 : index
    %0 = vector.load %arg2[%c0, %c0_0] : memref<8x256xf32, #tpu.memory_space<vmem>>, vector<8x256xf32>
    %c0_1 = arith.constant 0 : index
    %c0_2 = arith.constant 0 : index
    %1 = vector.load %arg3[%c0_1, %c0_2] : memref<8x256xf32, #tpu.memory_space<vmem>>, vector<8x256xf32>
    %c0_3 = arith.constant 0 : index
    %c0_4 = arith.constant 0 : index
    %2 = vector.load %arg4[%c0_3, %c0_4] : memref<8x256xf32, #tpu.memory_space<vmem>>, vector<8x256xf32>
    %c0_5 = arith.constant 0 : index
    %c0_6 = arith.constant 0 : index
    %3 = vector.load %arg5[%c0_5, %c0_6] : memref<8x256xf32, #tpu.memory_space<vmem>>, vector<8x256xf32>
    %c0_7 = arith.constant 0 : index
    %c0_8 = arith.constant 0 : index
    %4 = vector.load %arg6[%c0_7, %c0_8] : memref<8x256xf32, #tpu.memory_space<vmem>>, vector<8x256xf32>
    %c0_9 = arith.constant 0 : index
    %c0_10 = arith.constant 0 : index
    %5 = vector.load %arg7[%c0_9, %c0_10] : memref<1x256xf32, #tpu.memory_space<vmem>>, vector<1x256xf32>
    %cst = arith.constant 0.000000e+00 : f32
    %6 = vector.broadcast %cst : f32 to vector<8x256xf32>
    %7 = arith.cmpf ogt, %3, %6 : vector<8x256xf32>
    %cst_11 = arith.constant 0.951229453 : f32
    %8 = vector.broadcast %cst_11 : f32 to vector<8x256xf32>
    %9 = arith.mulf %8, %4 : vector<8x256xf32>
    %cst_12 = arith.constant 0.0487705767 : f32
    %10 = vector.broadcast %cst_12 : f32 to vector<8x256xf32>
    %11 = arith.mulf %10, %1 : vector<8x256xf32>
    %12 = arith.addf %9, %11 : vector<8x256xf32>
    %13 = vector.broadcast %5 : vector<1x256xf32> to vector<8x256xf32>
    %14 = arith.mulf %13, %12 : vector<8x256xf32>
    %cst_13 = arith.constant 1.000000e+00 : f32
    %15 = vector.broadcast %cst_13 : f32 to vector<8x256xf32>
    %16 = arith.addf %15, %14 : vector<8x256xf32>
    %cst_14 = arith.constant 0.951229453 : f32
    %17 = vector.broadcast %cst_14 : f32 to vector<8x256xf32>
    %18 = arith.mulf %17, %2 : vector<8x256xf32>
    %cst_15 = arith.constant 0.0487705767 : f32
    %19 = vector.broadcast %cst_15 : f32 to vector<8x256xf32>
    %20 = arith.mulf %19, %0 : vector<8x256xf32>
    %21 = arith.addf %18, %20 : vector<8x256xf32>
    %22 = arith.mulf %1, %16 : vector<8x256xf32>
    %23 = arith.subf %21, %22 : vector<8x256xf32>
    %24 = arith.cmpf ogt, %23, %16 : vector<8x256xf32>
    %25 = arith.extui %24 : vector<8x256xi1> to vector<8x256xi32>
    %26 = arith.sitofp %25 : vector<8x256xi32> to vector<8x256xf32>
    %cst_16 = arith.constant 0.000000e+00 : f32
    %27 = vector.broadcast %cst_16 : f32 to vector<8x256xf32>
    %28 = arith.select %7, %27, %26 : vector<8x256xi1>, vector<8x256xf32>
    %cst_17 = arith.constant 1.000000e+00 : f32
    %29 = vector.broadcast %cst_17 : f32 to vector<8x256xf32>
    %30 = arith.subf %3, %29 : vector<8x256xf32>
    %cst_18 = arith.constant 0.000000e+00 : f32
    %cst_19 = arith.constant 1.000000e+00 : f32
    %31 = vector.broadcast %cst_18 : f32 to vector<8x256xf32>
    %32 = arith.maximumf %31, %30 : vector<8x256xf32>
    %33 = vector.broadcast %cst_19 : f32 to vector<8x256xf32>
    %34 = arith.minimumf %33, %32 : vector<8x256xf32>
    %cst_20 = arith.constant 1.000000e+00 : f32
    %35 = vector.broadcast %cst_20 : f32 to vector<8x256xf32>
    %36 = arith.mulf %35, %28 : vector<8x256xf32>
    %37 = arith.select %7, %34, %36 : vector<8x256xi1>, vector<8x256xf32>
    %c0_21 = arith.constant 0 : index
    %c0_22 = arith.constant 0 : index
    %38 = vector.load %arg8[%c0_21, %c0_22] : memref<8x256xf32, #tpu.memory_space<vmem>>, vector<8x256xf32>
    tpu.vector_store %arg8[%c0_21, %c0_22], %28 {strides = array<i32>} : memref<8x256xf32, #tpu.memory_space<vmem>>, vector<8x256xf32>,
    %c0_23 = arith.constant 0 : index
    %c0_24 = arith.constant 0 : index
    %39 = vector.load %arg9[%c0_23, %c0_24] : memref<8x256xf32, #tpu.memory_space<vmem>>, vector<8x256xf32>
    tpu.vector_store %arg9[%c0_23, %c0_24], %23 {strides = array<i32>} : memref<8x256xf32, #tpu.memory_space<vmem>>, vector<8x256xf32>,
    %c0_25 = arith.constant 0 : index
    %c0_26 = arith.constant 0 : index
    %40 = vector.load %arg10[%c0_25, %c0_26] : memref<8x256xf32, #tpu.memory_space<vmem>>, vector<8x256xf32>
    tpu.vector_store %arg10[%c0_25, %c0_26], %37 {strides = array<i32>} : memref<8x256xf32, #tpu.memory_space<vmem>>, vector<8x256xf32>,
    %c0_27 = arith.constant 0 : index
    %c0_28 = arith.constant 0 : index
    %41 = vector.load %arg11[%c0_27, %c0_28] : memref<8x256xf32, #tpu.memory_space<vmem>>, vector<8x256xf32>
    tpu.vector_store %arg11[%c0_27, %c0_28], %12 {strides = array<i32>} : memref<8x256xf32, #tpu.memory_space<vmem>>, vector<8x256xf32>,
    return
  }
  func.func @transform_0(%arg0: i32, %arg1: i32) -> (i32, i32) {
    %c0_i32 = arith.constant 0 : i32
    return %arg1, %arg0 : i32, i32
  }
  func.func @transform_1(%arg0: i32, %arg1: i32) -> (i32, i32) {
    %c0_i32 = arith.constant 0 : i32
    return %arg1, %arg0 : i32, i32
  }
  func.func @transform_2(%arg0: i32, %arg1: i32) -> (i32, i32) {
    %c0_i32 = arith.constant 0 : i32
    return %arg1, %arg0 : i32, i32
  }
  func.func @transform_3(%arg0: i32, %arg1: i32) -> (i32, i32) {
    %c0_i32 = arith.constant 0 : i32
    return %arg1, %arg0 : i32, i32
  }
  func.func @transform_4(%arg0: i32, %arg1: i32) -> (i32, i32) {
    %c0_i32 = arith.constant 0 : i32
    return %arg1, %arg0 : i32, i32
  }
  func.func @transform_5(%arg0: i32, %arg1: i32) -> (i32, i32) {
    %c0_i32 = arith.constant 0 : i32
    %c0_i32_0 = arith.constant 0 : i32
    return %c0_i32, %arg0 : i32, i32
  }
  func.func @transform_6(%arg0: i32, %arg1: i32) -> (i32, i32) {
    %c0_i32 = arith.constant 0 : i32
    return %arg1, %arg0 : i32, i32
  }
  func.func @transform_7(%arg0: i32, %arg1: i32) -> (i32, i32) {
    %c0_i32 = arith.constant 0 : i32
    return %arg1, %arg0 : i32, i32
  }
  func.func @transform_8(%arg0: i32, %arg1: i32) -> (i32, i32) {
    %c0_i32 = arith.constant 0 : i32
    return %arg1, %arg0 : i32, i32
  }
  func.func @transform_9(%arg0: i32, %arg1: i32) -> (i32, i32) {
    %c0_i32 = arith.constant 0 : i32
    return %arg1, %arg0 : i32, i32
  }
}

</mosaic_0001>

<llo_original>
// kernel: ada_iaf_psc_delta_forward.1
$region0: #{ada_iaf_psc_delta_forward.1}
  #allocation0 [shape = 'u32[]', space=smem, size = 0x4, offset = 0x4, fixed_abs, tag = 'smem constant byte address 0x4 - core index']
  #allocation1 [shape = 'u32[144,128]{1,0:T(1,128)}', space=vmem, size = 0x12000, scoped, tag = 'internal scratch']
  %s0 = inlined_call_operand.hbm [shape: f32[8,256], index: 0, kind: input, shape index: {}]
  %s1 = inlined_call_operand.vmem [shape: f32[8,256], index: 1, kind: input, shape index: {}, may-alias: {1,6}]
  %s2 = inlined_call_operand.vmem [shape: f32[8,256], index: 2, kind: input, shape index: {}, may-alias: {2,7}]
  %s3 = inlined_call_operand.hbm [shape: f32[8,256], index: 3, kind: input, shape index: {}, may-alias: {3,8}]
  %s4 = inlined_call_operand.vmem [shape: f32[8,256], index: 4, kind: input, shape index: {}, may-alias: {4,9}]
  %s5 = inlined_call_operand.vmem [shape: f32[1,256], index: 5, kind: input, shape index: {}]
  %s6 = inlined_call_operand.vmem [shape: f32[8,256], index: 6, kind: output, shape index: {0}, may-alias: {1,6}]
  %s7 = inlined_call_operand.vmem [shape: f32[8,256], index: 7, kind: output, shape index: {1}, may-alias: {2,7}]
  %s8 = inlined_call_operand.hbm [shape: f32[8,256], index: 8, kind: output, shape index: {2}, may-alias: {3,8}]
  %s9 = inlined_call_operand.vmem [shape: f32[8,256], index: 9, kind: output, shape index: {3}, may-alias: {4,9}]
  %10 = xla_tuple %s6, %s7, %s8, %s9
  %s11 = sld [smem:[#allocation0]]
  $region66: #{ada_iaf_psc_delta_forward.1} parent=0
    _
  %s13 = ssub.s32 1, %s11
  %s14 = scalar_select 0, %s13, %s11
  $region1: #{ada_iaf_psc_delta_forward.1} parent=0
    #allocation2 [shape = 'u8[8192]{0}', space=vmem, size = 0x2000, scoped, tag = 'input window, operand 0, single buffered']
    #allocation3 [shape = 's32[1]{0}', space=sflag, size = 0x4, scoped, tag = 'scoped memory for ada_iaf_psc_delta_forward.1']
    #allocation4 [shape = 's32[1]{0}', space=sflag, size = 0x4, scoped, tag = 'scoped memory for ada_iaf_psc_delta_forward.1']
    #allocation5 [shape = 'u8[8192]{0}', space=vmem, size = 0x2000, scoped, tag = 'input window, operand 3, single buffered']
    #allocation6 [shape = 's32[1]{0}', space=sflag, size = 0x4, scoped, tag = 'scoped memory for ada_iaf_psc_delta_forward.1']
    #allocation7 [shape = 'u8[8192]{0}', space=vmem, size = 0x2000, scoped, tag = 'output window, operand 2, single buffered']
    %15 = vsyncpa [#allocation3], 0
    %16 = vsyncpa [#allocation6], 0
    %17 = vsyncpa [#allocation4], 0
    // Predicated region
    $region2: #{ada_iaf_psc_delta_forward.1} parent=1 // pred_check
      _
    $region3: #{ada_iaf_psc_delta_forward.1} parent=1 // pred_check_branch
      %19 = sbr.rel (0) target = $region5
    $region4: #{ada_iaf_psc_delta_forward.1} parent=1 // pred_region
      %s21 = ssub.s32 256, 256
      %22 = vsyncadd [#allocation3], %s21
      %s24 = sshll.u32 [#allocation2], 4
      %s25 = int_to_ptr.vmem [resolvable:$true] %s24
      %27 = dma.hbm_to_vmem [thread:$0]  %s0, 256, %s25, [#allocation3]
    $region5: #{ada_iaf_psc_delta_forward.1} parent=1 // pred_fallthru
      _
    // Predicated region
    $region6: #{ada_iaf_psc_delta_forward.1} parent=1 // pred_check
      _
    $region7: #{ada_iaf_psc_delta_forward.1} parent=1 // pred_check_branch
      %29 = sbr.rel (0) target = $region9
    $region8: #{ada_iaf_psc_delta_forward.1} parent=1 // pred_region
      _
    $region9: #{ada_iaf_psc_delta_forward.1} parent=1 // pred_fallthru
      _
    // Predicated region
    $region10: #{ada_iaf_psc_delta_forward.1} parent=1 // pred_check
      _
    $region11: #{ada_iaf_psc_delta_forward.1} parent=1 // pred_check_branch
      %31 = sbr.rel (0) target = $region13
    $region12: #{ada_iaf_psc_delta_forward.1} parent=1 // pred_region
      _
    $region13: #{ada_iaf_psc_delta_forward.1} parent=1 // pred_fallthru
      _
    // Predicated region
    $region14: #{ada_iaf_psc_delta_forward.1} parent=1 // pred_check
      _
    $region15: #{ada_iaf_psc_delta_forward.1} parent=1 // pred_check_branch
      %33 = sbr.rel (0) target = $region17
    $region16: #{ada_iaf_psc_delta_forward.1} parent=1 // pred_region
      %s35 = ssub.s32 256, 256
      %36 = vsyncadd [#allocation6], %s35
      %s38 = sshll.u32 [#allocation5], 4
      %s39 = int_to_ptr.vmem [resolvable:$true] %s38
      %41 = dma.hbm_to_vmem [thread:$0]  %s3, 256, %s39, [#allocation6]
    $region17: #{ada_iaf_psc_delta_forward.1} parent=1 // pred_fallthru
      _
    // Predicated region
    $region18: #{ada_iaf_psc_delta_forward.1} parent=1 // pred_check
      _
    $region19: #{ada_iaf_psc_delta_forward.1} parent=1 // pred_check_branch
      %43 = sbr.rel (0) target = $region21
    $region20: #{ada_iaf_psc_delta_forward.1} parent=1 // pred_region
      _
    $region21: #{ada_iaf_psc_delta_forward.1} parent=1 // pred_fallthru
      _
    // Predicated region
    $region22: #{ada_iaf_psc_delta_forward.1} parent=1 // pred_check
      _
    $region23: #{ada_iaf_psc_delta_forward.1} parent=1 // pred_check_branch
      %45 = sbr.rel (0) target = $region25
    $region24: #{ada_iaf_psc_delta_forward.1} parent=1 // pred_region
      _
    $region25: #{ada_iaf_psc_delta_forward.1} parent=1 // pred_fallthru
      _
    // Predicated region
    $region26: #{ada_iaf_psc_delta_forward.1} parent=1 // pred_check
      _
    $region27: #{ada_iaf_psc_delta_forward.1} parent=1 // pred_check_branch
      %47 = sbr.rel (0) target = $region29
    $region28: #{ada_iaf_psc_delta_forward.1} parent=1 // pred_region
      %48 = dma.done [#allocation3], 256
    $region29: #{ada_iaf_psc_delta_forward.1} parent=1 // pred_fallthru
      _
    // Predicated region
    $region30: #{ada_iaf_psc_delta_forward.1} parent=1 // pred_check
      _
    $region31: #{ada_iaf_psc_delta_forward.1} parent=1 // pred_check_branch
      %50 = sbr.rel (0) target = $region33
    $region32: #{ada_iaf_psc_delta_forward.1} parent=1 // pred_region
      %51 = dma.done [#allocation6], 256
    $region33: #{ada_iaf_psc_delta_forward.1} parent=1 // pred_fallthru
      _
    %v52 = vld [vmem:[#allocation2] sm:$0xff]
    %v53 = vld [vmem:[#allocation2 + $0x8] sm:$0xff]
    %v54 = vld [vmem:[%s1] sm:$0xff]
    %v55 = vld [vmem:[%s1 + $0x8] sm:$0xff]
    %v56 = vld [vmem:[%s2] sm:$0xff]
    %v57 = vld [vmem:[%s2 + $0x8] sm:$0xff]
    %v58 = vld [vmem:[#allocation5] sm:$0xff]
    %v59 = vld [vmem:[#allocation5 + $0x8] sm:$0xff]
    %v60 = vld [vmem:[%s4] sm:$0xff]
    %v61 = vld [vmem:[%s4 + $0x8] sm:$0xff]
    %v62 = vld [vmem:[%s5] sm:$0x3]
    %vm63 = vcmp.gt.f32.partialorder %v58, 0.0
    %vm64 = vcmp.gt.f32.partialorder %v59, 0.0
    %v65 = vmul.f32 %v60, 0.95122945
    %v66 = vmul.f32 %v61, 0.95122945
    %v67 = vmul.f32 %v54, 0.048770577
    %v68 = vmul.f32 %v55, 0.048770577
    %v69 = vadd.f32 %v65, %v67
    %v70 = vadd.f32 %v66, %v68
    %v72 = vlaneseq
    %v73 = vshrl.u32 %v72, 7
    %v74 = vsub.s32 0, %v73
    %v75 = vrot.slane %v62, %v74
    %v76 = vlaneseq
    %v77 = vshrl.u32 %v76, 7
    %v78 = vsub.s32 1, %v77
    %v79 = vrot.slane %v62, %v78
    %v82 = vmul.f32 %v75, %v69
    %v83 = vmul.f32 %v79, %v70
    %v84 = vadd.f32 %v82, 1.0
    %v85 = vadd.f32 %v83, 1.0
    %v86 = vmul.f32 %v56, 0.95122945
    %v87 = vmul.f32 %v57, 0.95122945
    %v88 = vmul.f32 %v52, 0.048770577
    %v89 = vmul.f32 %v53, 0.048770577
    %v90 = vadd.f32 %v86, %v88
    %v91 = vadd.f32 %v87, %v89
    %v92 = vmul.f32 %v54, %v84
    %v93 = vmul.f32 %v55, %v85
    %v94 = vsub.f32 %v90, %v92
    %v95 = vsub.f32 %v91, %v93
    %vm96 = vcmp.gt.f32.partialorder %v94, %v84
    %vm97 = vcmp.gt.f32.partialorder %v95, %v85
    %v98 = vsel %vm96, 1, 0
    %v99 = vsel %vm97, 1, 0
    %v100 = vcvt.s32.f32 %v98
    %v101 = vcvt.s32.f32 %v99
    %v102 = vsel %vm63, 0.0, %v100
    %v103 = vsel %vm64, 0.0, %v101
    %v104 = vsub.f32 %v58, 1.0
    %v105 = vsub.f32 %v59, 1.0
    %v106 = vmax.f32 %v104, 0.0
    %v107 = vmax.f32 %v105, 0.0
    %v108 = vmin.f32 %v106, 1.0
    %v109 = vmin.f32 %v107, 1.0
    %v110 = vsel %vm63, %v108, %v100
    %v111 = vsel %vm64, %v109, %v101
    %112 = vst [vmem:[%s6] sm:$0xff] %v102
    %113 = vst [vmem:[%s6 + $0x8] sm:$0xff] %v103
    %114 = vst [vmem:[%s7] sm:$0xff] %v94
    %115 = vst [vmem:[%s7 + $0x8] sm:$0xff] %v95
    %116 = vst [vmem:[#allocation7] sm:$0xff] %v110
    %117 = vst [vmem:[#allocation7 + $0x8] sm:$0xff] %v111
    %118 = vst [vmem:[%s9] sm:$0xff] %v69
    %119 = vst [vmem:[%s9 + $0x8] sm:$0xff] %v70
    // Predicated region
    $region34: #{ada_iaf_psc_delta_forward.1} parent=1 // pred_check
      _
    $region35: #{ada_iaf_psc_delta_forward.1} parent=1 // pred_check_branch
      %121 = sbr.rel (0) target = $region37
    $region36: #{ada_iaf_psc_delta_forward.1} parent=1 // pred_region
      _
    $region37: #{ada_iaf_psc_delta_forward.1} parent=1 // pred_fallthru
      _
    // Predicated region
    $region38: #{ada_iaf_psc_delta_forward.1} parent=1 // pred_check
      _
    $region39: #{ada_iaf_psc_delta_forward.1} parent=1 // pred_check_branch
      %123 = sbr.rel (0) target = $region41
    $region40: #{ada_iaf_psc_delta_forward.1} parent=1 // pred_region
      _
    $region41: #{ada_iaf_psc_delta_forward.1} parent=1 // pred_fallthru
      _
    // Predicated region
    $region42: #{ada_iaf_psc_delta_forward.1} parent=1 // pred_check
      _
    $region43: #{ada_iaf_psc_delta_forward.1} parent=1 // pred_check_branch
      %125 = sbr.rel (0) target = $region45
    $region44: #{ada_iaf_psc_delta_forward.1} parent=1 // pred_region
      %s127 = ssub.s32 256, 256
      %128 = vsyncadd [#allocation4], %s127
      %s130 = sshll.u32 [#allocation7], 4
      %s131 = int_to_ptr.vmem [resolvable:$true] %s130
      %133 = dma.vmem_to_hbm [thread:$0]  %s131, 256, %s8, [#allocation4]
    $region45: #{ada_iaf_psc_delta_forward.1} parent=1 // pred_fallthru
      _
    // Predicated region
    $region46: #{ada_iaf_psc_delta_forward.1} parent=1 // pred_check
      _
    $region47: #{ada_iaf_psc_delta_forward.1} parent=1 // pred_check_branch
      %135 = sbr.rel (0) target = $region49
    $region48: #{ada_iaf_psc_delta_forward.1} parent=1 // pred_region
      _
    $region49: #{ada_iaf_psc_delta_forward.1} parent=1 // pred_fallthru
      _
    // Predicated region
    $region50: #{ada_iaf_psc_delta_forward.1} parent=1 // pred_check
      _
    $region51: #{ada_iaf_psc_delta_forward.1} parent=1 // pred_check_branch
      %137 = sbr.rel (0) target = $region53
    $region52: #{ada_iaf_psc_delta_forward.1} parent=1 // pred_region
      _
    $region53: #{ada_iaf_psc_delta_forward.1} parent=1 // pred_fallthru
      _
    // Predicated region
    $region54: #{ada_iaf_psc_delta_forward.1} parent=1 // pred_check
      _
    $region55: #{ada_iaf_psc_delta_forward.1} parent=1 // pred_check_branch
      %139 = sbr.rel (0) target = $region57
    $region56: #{ada_iaf_psc_delta_forward.1} parent=1 // pred_region
      _
    $region57: #{ada_iaf_psc_delta_forward.1} parent=1 // pred_fallthru
      _
    // Predicated region
    $region58: #{ada_iaf_psc_delta_forward.1} parent=1 // pred_check
      _
    $region59: #{ada_iaf_psc_delta_forward.1} parent=1 // pred_check_branch
      %141 = sbr.rel (0) target = $region61
    $region60: #{ada_iaf_psc_delta_forward.1} parent=1 // pred_region
      %142 = dma.done [#allocation4], 256
    $region61: #{ada_iaf_psc_delta_forward.1} parent=1 // pred_fallthru
      _
    // Predicated region
    $region62: #{ada_iaf_psc_delta_forward.1} parent=1 // pred_check
      _
    $region63: #{ada_iaf_psc_delta_forward.1} parent=1 // pred_check_branch
      %144 = sbr.rel (0) target = $region65
    $region64: #{ada_iaf_psc_delta_forward.1} parent=1 // pred_region
      _
    $region65: #{ada_iaf_psc_delta_forward.1} parent=1 // pred_fallthru
      _
    %145 = vsyncpa [#allocation3], 1
    %146 = vsyncpa [#allocation6], 1
    %147 = vsyncpa [#allocation4], 1

</llo_original>
